<compile_context>
chip_gen: v5e
topology: v5e:2x2
jax: 0.10.0
libtpu: 0.0.40
codegen_flags: <defaults>
</compile_context>

<pallas_src>
import jax
import jax.numpy as jnp
from jax.experimental import pallas as pl
from jax.experimental.pallas import tpu as pltpu

# ----------------------------- dimensions -----------------------------------
BATCH = 8        # per-triplet-branch batch size
IN_DIM = 32      # input feature dim
HID_DIM = 64     # hidden dim of the embedding MLP
EMB_DIM = 16     # embedding dim

# Whole-array-in-VMEM spec (no grid, no tiling needed at this size).
_VMEM = pl.BlockSpec(memory_space=pltpu.MemorySpace.VMEM)


# ------------------------------ kernels --------------------------------------
def _triplet_embed_kernel(x1_ref, x2_ref, x3_ref,
                          w1_ref, b1_ref, w2_ref, b2_ref,
                          o1_ref, o2_ref, o3_ref):
    """Shared-weight MLP applied to three branches in ONE M=3*B matmul."""
    b = x1_ref.shape[0]
    # Stack the three branches in VMEM (sublane-aligned: b is a multiple of 8).
    x = jnp.concatenate([x1_ref[...], x2_ref[...], x3_ref[...]], axis=0)
    h = jnp.dot(x, w1_ref[...], preferred_element_type=jnp.float32) + b1_ref[...]
    h = jnp.maximum(h, 0.0)                                     # ReLU on VPU
    out = jnp.dot(h, w2_ref[...], preferred_element_type=jnp.float32) + b2_ref[...]
    o1_ref[...] = out[0:b].astype(o1_ref.dtype)
    o2_ref[...] = out[b:2 * b].astype(o2_ref.dtype)
    o3_ref[...] = out[2 * b:3 * b].astype(o3_ref.dtype)


def _embed_kernel(x_ref, w1_ref, b1_ref, w2_ref, b2_ref, o_ref):
    """Single-branch embedding (TripletNet.get_embedding)."""
    h = jnp.dot(x_ref[...], w1_ref[...], preferred_element_type=jnp.float32) + b1_ref[...]
    h = jnp.maximum(h, 0.0)
    out = jnp.dot(h, w2_ref[...], preferred_element_type=jnp.float32) + b2_ref[...]
    o_ref[...] = out.astype(o_ref.dtype)


# --------------------------- TripletNet forward ------------------------------
def triplet_net_forward(x1, x2, x3, params):
    """Pallas equivalent of TripletNet.forward: shared embedding_net on 3 inputs."""
    w1, b1, w2, b2 = params
    b = x1.shape[0]
    out_sds = jax.ShapeDtypeStruct((b, EMB_DIM), jnp.float32)
    return pl.pallas_call(
        _triplet_embed_kernel,
        out_shape=(out_sds, out_sds, out_sds),
        in_specs=[_VMEM] * 7,
        out_specs=(_VMEM, _VMEM, _VMEM),
    )(x1, x2, x3, w1, b1, w2, b2)


def get_embedding(x, params):
    """Pallas equivalent of TripletNet.get_embedding."""
    w1, b1, w2, b2 = params
    return pl.pallas_call(
        _embed_kernel,
        out_shape=jax.ShapeDtypeStruct((x.shape[0], EMB_DIM), jnp.float32),
        in_specs=[_VMEM] * 5,
        out_specs=_VMEM,
    )(x, w1, b1, w2, b2)


# ------------------------------ reference ------------------------------------
def _embed_ref(x, w1, b1, w2, b2):
    h = jnp.maximum(x @ w1 + b1, 0.0)
    return h @ w2 + b2


# -------------------------------- main ---------------------------------------
if __name__ == "__main__":
    key = jax.random.PRNGKey(0)
    k1, k2, k3, kw1, kb1, kw2, kb2 = jax.random.split(key, 7)

    # Deterministic parameter init (PyTorch-Linear-like uniform scaling).
    lim1 = 1.0 / (IN_DIM ** 0.5)
    lim2 = 1.0 / (HID_DIM ** 0.5)
    w1 = jax.random.uniform(kw1, (IN_DIM, HID_DIM), jnp.float32, -lim1, lim1)
    b1 = jax.random.uniform(kb1, (1, HID_DIM), jnp.float32, -lim1, lim1)
    w2 = jax.random.uniform(kw2, (HID_DIM, EMB_DIM), jnp.float32, -lim2, lim2)
    b2 = jax.random.uniform(kb2, (1, EMB_DIM), jnp.float32, -lim2, lim2)
    params = (w1, b1, w2, b2)

    # Triplet inputs.
    x1 = jax.random.normal(k1, (BATCH, IN_DIM), jnp.float32)
    x2 = jax.random.normal(k2, (BATCH, IN_DIM), jnp.float32)
    x3 = jax.random.normal(k3, (BATCH, IN_DIM), jnp.float32)

    o1, o2, o3 = jax.block_until_ready(
        jax.jit(triplet_net_forward)(x1, x2, x3, params))
    e1 = jax.block_until_ready(jax.jit(get_embedding)(x1, params))

    # Correctness check against a plain-JAX reference of the same embedding net.
    r1 = _embed_ref(x1, *params)
    r2 = _embed_ref(x2, *params)
    r3 = _embed_ref(x3, *params)
    assert o1.shape == (BATCH, EMB_DIM)
    assert o2.shape == (BATCH, EMB_DIM)
    assert o3.shape == (BATCH, EMB_DIM)
    assert jnp.allclose(o1, r1, atol=1e-5, rtol=1e-5)
    assert jnp.allclose(o2, r2, atol=1e-5, rtol=1e-5)
    assert jnp.allclose(o3, r3, atol=1e-5, rtol=1e-5)
    assert jnp.allclose(e1, r1, atol=1e-5, rtol=1e-5)

    print("KERNEL_OK")
</pallas_src>

<mosaic_0001>
module attributes {stable_mosaic.version = 11 : i64} {
  func.func @_triplet_embed_kernel(%arg0: memref<8x32xf32, #tpu.memory_space<vmem>>, %arg1: memref<8x32xf32, #tpu.memory_space<vmem>>, %arg2: memref<8x32xf32, #tpu.memory_space<vmem>>, %arg3: memref<32x64xf32, #tpu.memory_space<vmem>>, %arg4: memref<1x64xf32, #tpu.memory_space<vmem>>, %arg5: memref<64x16xf32, #tpu.memory_space<vmem>>, %arg6: memref<1x16xf32, #tpu.memory_space<vmem>>, %arg7: memref<8x16xf32, #tpu.memory_space<vmem>>, %arg8: memref<8x16xf32, #tpu.memory_space<vmem>>, %arg9: memref<8x16xf32, #tpu.memory_space<vmem>>) attributes {dimension_semantics = [], scalar_prefetch = 0 : i64, scratch_operands = 0 : i64, tpu.core_type = #tpu.core_type<tc>} {
    %c0 = arith.constant 0 : index
    %c0_0 = arith.constant 0 : index
    %0 = vector.load %arg0[%c0, %c0_0] : memref<8x32xf32, #tpu.memory_space<vmem>>, vector<8x32xf32>
    %c0_1 = arith.constant 0 : index
    %c0_2 = arith.constant 0 : index
    %1 = vector.load %arg1[%c0_1, %c0_2] : memref<8x32xf32, #tpu.memory_space<vmem>>, vector<8x32xf32>
    %c0_3 = arith.constant 0 : index
    %c0_4 = arith.constant 0 : index
    %2 = vector.load %arg2[%c0_3, %c0_4] : memref<8x32xf32, #tpu.memory_space<vmem>>, vector<8x32xf32>
    %3 = tpu.concatenate %0, %1, %2 in 0 : vector<8x32xf32>, vector<8x32xf32>, vector<8x32xf32> -> vector<24x32xf32>
    %c0_5 = arith.constant 0 : index
    %c0_6 = arith.constant 0 : index
    %4 = vector.load %arg3[%c0_5, %c0_6] : memref<32x64xf32, #tpu.memory_space<vmem>>, vector<32x64xf32>
    %cst = arith.constant dense<0.000000e+00> : vector<24x64xf32>
    %5 = tpu.matmul %3, %4, %cst {dimension_numbers = #tpu.dot_dimension_numbers<[1], [0], [0], [1], [0, 0, 1, 1], [], []>} : vector<24x32xf32>, vector<32x64xf32>, vector<24x64xf32> -> vector<24x64xf32>
    %c0_7 = arith.constant 0 : index
    %c0_8 = arith.constant 0 : index
    %6 = vector.load %arg4[%c0_7, %c0_8] : memref<1x64xf32, #tpu.memory_space<vmem>>, vector<1x64xf32>
    %7 = vector.broadcast %6 : vector<1x64xf32> to vector<24x64xf32>
    %8 = arith.addf %5, %7 : vector<24x64xf32>
    %cst_9 = arith.constant 0.000000e+00 : f32
    %9 = vector.broadcast %cst_9 : f32 to vector<24x64xf32>
    %10 = arith.maximumf %8, %9 : vector<24x64xf32>
    %c0_10 = arith.constant 0 : index
    %c0_11 = arith.constant 0 : index
    %11 = vector.load %arg5[%c0_10, %c0_11] : memref<64x16xf32, #tpu.memory_space<vmem>>, vector<64x16xf32>
    %cst_12 = arith.constant dense<0.000000e+00> : vector<24x16xf32>
    %12 = tpu.matmul %10, %11, %cst_12 {dimension_numbers = #tpu.dot_dimension_numbers<[1], [0], [0], [1], [0, 0, 1, 1], [], []>} : vector<24x64xf32>, vector<64x16xf32>, vector<24x16xf32> -> vector<24x16xf32>
    %c0_13 = arith.constant 0 : index
    %c0_14 = arith.constant 0 : index
    %13 = vector.load %arg6[%c0_13, %c0_14] : memref<1x16xf32, #tpu.memory_space<vmem>>, vector<1x16xf32>
    %14 = vector.broadcast %13 : vector<1x16xf32> to vector<24x16xf32>
    %15 = arith.addf %12, %14 : vector<24x16xf32>
    %16 = vector.extract_strided_slice %15 {offsets = [0, 0], sizes = [8, 16], strides = [1, 1]} : vector<24x16xf32> to vector<8x16xf32>
    %c0_15 = arith.constant 0 : index
    %c0_16 = arith.constant 0 : index
    %17 = vector.load %arg7[%c0_15, %c0_16] : memref<8x16xf32, #tpu.memory_space<vmem>>, vector<8x16xf32>
    tpu.vector_store %arg7[%c0_15, %c0_16], %16 {strides = array<i32>} : memref<8x16xf32, #tpu.memory_space<vmem>>, vector<8x16xf32>,
    %18 = vector.extract_strided_slice %15 {offsets = [8, 0], sizes = [8, 16], strides = [1, 1]} : vector<24x16xf32> to vector<8x16xf32>
    %c0_17 = arith.constant 0 : index
    %c0_18 = arith.constant 0 : index
    %19 = vector.load %arg8[%c0_17, %c0_18] : memref<8x16xf32, #tpu.memory_space<vmem>>, vector<8x16xf32>
    tpu.vector_store %arg8[%c0_17, %c0_18], %18 {strides = array<i32>} : memref<8x16xf32, #tpu.memory_space<vmem>>, vector<8x16xf32>,
    %20 = vector.extract_strided_slice %15 {offsets = [16, 0], sizes = [8, 16], strides = [1, 1]} : vector<24x16xf32> to vector<8x16xf32>
    %c0_19 = arith.constant 0 : index
    %c0_20 = arith.constant 0 : index
    %21 = vector.load %arg9[%c0_19, %c0_20] : memref<8x16xf32, #tpu.memory_space<vmem>>, vector<8x16xf32>
    tpu.vector_store %arg9[%c0_19, %c0_20], %20 {strides = array<i32>} : memref<8x16xf32, #tpu.memory_space<vmem>>, vector<8x16xf32>,
    return
  }
}

</mosaic_0001>

<llo_original>
// kernel: triplet_net_forward.1
$region0: #{triplet_net_forward.1}
  #allocation0 [shape = 'u32[]', space=smem, size = 0x4, offset = 0x4, fixed_abs, tag = 'smem constant byte address 0x4 - core index']
  #allocation1 [shape = 'u32[72,128]{1,0:T(1,128)}', space=vmem, size = 0x9000, scoped, tag = 'internal scratch']
  %s0 = inlined_call_operand.vmem [shape: f32[8,32], index: 0, kind: input, shape index: {}]
  %s1 = inlined_call_operand.vmem [shape: f32[8,32], index: 1, kind: input, shape index: {}]
  %s2 = inlined_call_operand.vmem [shape: f32[8,32], index: 2, kind: input, shape index: {}]
  %s3 = inlined_call_operand.vmem [shape: f32[32,64], index: 3, kind: input, shape index: {}]
  %s4 = inlined_call_operand.vmem [shape: f32[1,64], index: 4, kind: input, shape index: {}]
  %s5 = inlined_call_operand.vmem [shape: f32[64,16], index: 5, kind: input, shape index: {}]
  %s6 = inlined_call_operand.vmem [shape: f32[1,16], index: 6, kind: input, shape index: {}]
  %s7 = inlined_call_operand.hbm [shape: f32[8,16], index: 7, kind: output, shape index: {0}]
  %s8 = inlined_call_operand.hbm [shape: f32[8,16], index: 8, kind: output, shape index: {1}]
  %s9 = inlined_call_operand.hbm [shape: f32[8,16], index: 9, kind: output, shape index: {2}]
  %10 = xla_tuple %s7, %s8, %s9
  %s11 = sld [smem:[#allocation0]]
  $region54: #{triplet_net_forward.1} parent=0
    _
  %s13 = ssub.s32 1, %s11
  %s14 = scalar_select 0, %s13, %s11
  $region1: #{triplet_net_forward.1} parent=0
    #allocation2 [shape = 'u8[4096]{0}', space=vmem, size = 0x1000, scoped, tag = 'output window, operand 0, single buffered']
    #allocation3 [shape = 's32[1]{0}', space=sflag, size = 0x4, scoped, tag = 'scoped memory for triplet_net_forward.1']
    #allocation4 [shape = 'u8[4096]{0}', space=vmem, size = 0x1000, scoped, tag = 'output window, operand 1, single buffered']
    #allocation5 [shape = 's32[1]{0}', space=sflag, size = 0x4, scoped, tag = 'scoped memory for triplet_net_forward.1']
    #allocation6 [shape = 'u8[4096]{0}', space=vmem, size = 0x1000, scoped, tag = 'output window, operand 2, single buffered']
    %15 = vsyncpa [#allocation3], 0
    %16 = vsyncpa [#allocation5], 0
    // Predicated region
    $region2: #{triplet_net_forward.1} parent=1 // pred_check
      _
    $region3: #{triplet_net_forward.1} parent=1 // pred_check_branch
      %18 = sbr.rel (0) target = $region5
    $region4: #{triplet_net_forward.1} parent=1 // pred_region
      _
    $region5: #{triplet_net_forward.1} parent=1 // pred_fallthru
      _
    // Predicated region
    $region6: #{triplet_net_forward.1} parent=1 // pred_check
      _
    $region7: #{triplet_net_forward.1} parent=1 // pred_check_branch
      %20 = sbr.rel (0) target = $region9
    $region8: #{triplet_net_forward.1} parent=1 // pred_region
      _
    $region9: #{triplet_net_forward.1} parent=1 // pred_fallthru
      _
    // Predicated region
    $region10: #{triplet_net_forward.1} parent=1 // pred_check
      _
    $region11: #{triplet_net_forward.1} parent=1 // pred_check_branch
      %22 = sbr.rel (0) target = $region13
    $region12: #{triplet_net_forward.1} parent=1 // pred_region
      _
    $region13: #{triplet_net_forward.1} parent=1 // pred_fallthru
      _
    // Predicated region
    $region14: #{triplet_net_forward.1} parent=1 // pred_check
      _
    $region15: #{triplet_net_forward.1} parent=1 // pred_check_branch
      %24 = sbr.rel (0) target = $region17
    $region16: #{triplet_net_forward.1} parent=1 // pred_region
      _
    $region17: #{triplet_net_forward.1} parent=1 // pred_fallthru
      _
    // Predicated region
    $region18: #{triplet_net_forward.1} parent=1 // pred_check
      _
    $region19: #{triplet_net_forward.1} parent=1 // pred_check_branch
      %26 = sbr.rel (0) target = $region21
    $region20: #{triplet_net_forward.1} parent=1 // pred_region
      _
    $region21: #{triplet_net_forward.1} parent=1 // pred_fallthru
      _
    // Predicated region
    $region22: #{triplet_net_forward.1} parent=1 // pred_check
      _
    $region23: #{triplet_net_forward.1} parent=1 // pred_check_branch
      %28 = sbr.rel (0) target = $region25
    $region24: #{triplet_net_forward.1} parent=1 // pred_region
      _
    $region25: #{triplet_net_forward.1} parent=1 // pred_fallthru
      _
    // Predicated region
    $region26: #{triplet_net_forward.1} parent=1 // pred_check
      _
    $region27: #{triplet_net_forward.1} parent=1 // pred_check_branch
      %30 = sbr.rel (0) target = $region29
    $region28: #{triplet_net_forward.1} parent=1 // pred_region
      _
    $region29: #{triplet_net_forward.1} parent=1 // pred_fallthru
      _
    %v31 = vld [vmem:[%s0] sm:$0xff]
    %v32 = vld [vmem:[%s1] sm:$0xff]
    %v33 = vld [vmem:[%s2] sm:$0xff]
    %v34 = vld [vmem:[%s3] sm:$0xff]
    %v35 = vld [vmem:[%s3 + $0x8] sm:$0xff]
    %v36 = vld [vmem:[%s3 + $0x10] sm:$0xff]
    %v37 = vld [vmem:[%s3 + $0x18] sm:$0xff]
    %v38 = vld [vmem:[%s4] sm:$0x1]
    %v40 = vperm.slane %v38, 0
    %vm42 = vcmask 261120
    %v44 = vsel %vm42, %v31, 0
    %v47 = vsel %vm42, %v32, 0
    %v50 = vsel %vm42, %v33, 0
    %52 = vmatpush.msra.mxu0 0.0
    %53 = vmatpush.msra.mxu0 0.0
    %54 = vmatpush.msra.mxu0 0.0
    %55 = vmatpush.msra.mxu0 0.0
    %56 = vmatpush.msra.mxu0 0.0
    %57 = vmatpush.msra.mxu0 0.0
    %58 = vmatpush.msra.mxu0 0.0
    %59 = vmatpush.msra.mxu0 0.0
    %60 = vmatpush.msra.mxu0 0.0
    %61 = vmatpush.msra.mxu0 0.0
    %62 = vmatpush.msra.mxu0 0.0
    %63 = vmatpush.msra.mxu0 0.0
    %64 = vmatpush.msra.mxu0 %v37
    %65 = vmatpush.msra.mxu0 %v36
    %66 = vmatpush.msra.mxu0 %v35
    %67 = vmatpush.msra.mxu0 %v34
    %68 = vmatmul.f32.gmra.mxu0 %v44
    %v69 = vpop.f32.mrf.mxu0
    %v70 = vadd.f32 %v40, %v69
    %71 = vmatmul.f32.gmra.mxu0 %v47
    %v72 = vpop.f32.mrf.mxu0
    %v73 = vadd.f32 %v40, %v72
    %74 = vmatmul.f32.gmra.mxu0 %v50
    %v75 = vpop.f32.mrf.mxu0
    %v76 = vadd.f32 %v40, %v75
    %77 = vdwg.mxu0
    %v78 = vmax.f32 %v70, 0.0
    %v79 = vmax.f32 %v73, 0.0
    %v80 = vmax.f32 %v76, 0.0
    %v81 = vld [vmem:[%s5] sm:$0xff]
    %v82 = vld [vmem:[%s5 + $0x8] sm:$0xff]
    %v83 = vld [vmem:[%s5 + $0x10] sm:$0xff]
    %v84 = vld [vmem:[%s5 + $0x18] sm:$0xff]
    %v85 = vld [vmem:[%s5 + $0x20] sm:$0xff]
    %v86 = vld [vmem:[%s5 + $0x28] sm:$0xff]
    %v87 = vld [vmem:[%s5 + $0x30] sm:$0xff]
    %v88 = vld [vmem:[%s5 + $0x38] sm:$0xff]
    %v89 = vld [vmem:[%s6] sm:$0x1]
    %v91 = vperm.slane %v89, 0
    %vm93 = vcmask 523264
    %v95 = vsel %vm93, %v78, 0
    %v98 = vsel %vm93, %v79, 0
    %v101 = vsel %vm93, %v80, 0
    %103 = vmatpush.msra.mxu0 0.0
    %104 = vmatpush.msra.mxu0 0.0
    %105 = vmatpush.msra.mxu0 0.0
    %106 = vmatpush.msra.mxu0 0.0
    %107 = vmatpush.msra.mxu0 0.0
    %108 = vmatpush.msra.mxu0 0.0
    %109 = vmatpush.msra.mxu0 0.0
    %110 = vmatpush.msra.mxu0 0.0
    %111 = vmatpush.msra.mxu0 %v88
    %112 = vmatpush.msra.mxu0 %v87
    %113 = vmatpush.msra.mxu0 %v86
    %114 = vmatpush.msra.mxu0 %v85
    %115 = vmatpush.msra.mxu0 %v84
    %116 = vmatpush.msra.mxu0 %v83
    %117 = vmatpush.msra.mxu0 %v82
    %118 = vmatpush.msra.mxu0 %v81
    %119 = vmatmul.f32.gmra.mxu0 %v95
    %v120 = vpop.f32.mrf.mxu0
    %v121 = vadd.f32 %v91, %v120
    %122 = vmatmul.f32.gmra.mxu0 %v98
    %v123 = vpop.f32.mrf.mxu0
    %v124 = vadd.f32 %v91, %v123
    %125 = vmatmul.f32.gmra.mxu0 %v101
    %v126 = vpop.f32.mrf.mxu0
    %v127 = vadd.f32 %v91, %v126
    %128 = vdwg.mxu0
    %vm129 = vcmask 130048
    %130 = vst.msk [vmem:[#allocation2] sm:$0xff] %vm129, %v121
    %131 = vst.msk [vmem:[#allocation4] sm:$0xff] %vm129, %v124
    %132 = vst.msk [vmem:[#allocation6] sm:$0xff] %vm129, %v127
    // Predicated region
    $region30: #{triplet_net_forward.1} parent=1 // pred_check
      _
    $region31: #{triplet_net_forward.1} parent=1 // pred_check_branch
      %134 = sbr.rel (0) target = $region33
    $region32: #{triplet_net_forward.1} parent=1 // pred_region
      %136 = vsyncadd [#allocation3], 0
      %s138 = sshll.u32 [#allocation2], 4
      %s139 = int_to_ptr.vmem [resolvable:$true] %s138
      %s140 = sshll.u32 %s7, 4
      %s141 = int_to_ptr.hbm [resolvable:$true] %s140
      %143 = dma.vmem_to_hbm [thread:$0]  %s139, 128, %s141, [#allocation3]
    $region33: #{triplet_net_forward.1} parent=1 // pred_fallthru
      _
    // Predicated region
    $region34: #{triplet_net_forward.1} parent=1 // pred_check
      _
    $region35: #{triplet_net_forward.1} parent=1 // pred_check_branch
      %145 = sbr.rel (0) target = $region37
    $region36: #{triplet_net_forward.1} parent=1 // pred_region
      %147 = vsyncadd [#allocation5], 0
      %s149 = sshll.u32 [#allocation4], 4
      %s150 = int_to_ptr.vmem [resolvable:$true] %s149
      %s151 = sshll.u32 %s8, 4
      %s152 = int_to_ptr.hbm [resolvable:$true] %s151
      %154 = dma.vmem_to_hbm [thread:$0]  %s150, 128, %s152, [#allocation5]
    $region37: #{triplet_net_forward.1} parent=1 // pred_fallthru
      _
    // Predicated region
    $region38: #{triplet_net_forward.1} parent=1 // pred_check
      _
    $region39: #{triplet_net_forward.1} parent=1 // pred_check_branch
      %156 = sbr.rel (0) target = $region41
    $region40: #{triplet_net_forward.1} parent=1 // pred_region
      %158 = vsyncadd [#allocation5], 0
      %s160 = sshll.u32 [#allocation6], 4
      %s161 = int_to_ptr.vmem [resolvable:$true] %s160
      %s162 = sshll.u32 %s9, 4
      %s163 = int_to_ptr.hbm [resolvable:$true] %s162
      %165 = dma.vmem_to_hbm [thread:$0]  %s161, 128, %s163, [#allocation5]
    $region41: #{triplet_net_forward.1} parent=1 // pred_fallthru
      _
    // Predicated region
    $region42: #{triplet_net_forward.1} parent=1 // pred_check
      _
    $region43: #{triplet_net_forward.1} parent=1 // pred_check_branch
      %167 = sbr.rel (0) target = $region45
    $region44: #{triplet_net_forward.1} parent=1 // pred_region
      %169 = dma.done [#allocation3], 128
    $region45: #{triplet_net_forward.1} parent=1 // pred_fallthru
      _
    // Predicated region
    $region46: #{triplet_net_forward.1} parent=1 // pred_check
      _
    $region47: #{triplet_net_forward.1} parent=1 // pred_check_branch
      %171 = sbr.rel (0) target = $region49
    $region48: #{triplet_net_forward.1} parent=1 // pred_region
      %173 = dma.done [#allocation5], 128
    $region49: #{triplet_net_forward.1} parent=1 // pred_fallthru
      _
    // Predicated region
    $region50: #{triplet_net_forward.1} parent=1 // pred_check
      _
    $region51: #{triplet_net_forward.1} parent=1 // pred_check_branch
      %175 = sbr.rel (0) target = $region53
    $region52: #{triplet_net_forward.1} parent=1 // pred_region
      %177 = dma.done [#allocation5], 128
    $region53: #{triplet_net_forward.1} parent=1 // pred_fallthru
      _
    %178 = vsyncpa [#allocation3], 1
    %179 = vsyncpa [#allocation5], 1

</llo_original>
